<compile_context>
chip_gen: v7x
topology: tpu7x:2x2x1
jax: 0.10.0
libtpu: 0.0.40
codegen_flags: <defaults>
</compile_context>

<pallas_src>
import functools

import jax
import jax.numpy as jnp
from jax.experimental import pallas as pl
from jax.experimental.pallas import tpu as pltpu

_OUT_PAD = 8  # narrow output slab (>= 2 heads, multiple of 8 sublanes)


def _round_up(x, m):
    return ((x + m - 1) // m) * m


def _nystrom_v_kernel(x_ref, st_ref, sw_ref, b_ref, out_ref, *, bf16_head=False):
    # arg[i, j] = x_i . s_j - 0.5*||x_i||^2 - 0.5*||s_j||^2  (MXU, fp32 acc)
    arg = jnp.dot(x_ref[...], st_ref[...], preferred_element_type=jnp.float32)
    # Clamp tiny positive fp-cancellation residue so K <= 1, then exp (EUP).
    k = jnp.exp(jnp.minimum(arg, 0.0))                     # [TB, M] fp32
    sw = sw_ref[...]
    if bf16_head:
        k = k.astype(jnp.bfloat16)
        sw = sw.astype(jnp.bfloat16)
    out_ref[...] = (jnp.dot(k, sw, preferred_element_type=jnp.float32)
                    + b_ref[...])                          # [TB, OUT]


def prepare_nystrom_params(nystrom_samples, S1, eig_vals1, w1, b1, w2, b2,
                           out_pad=_OUT_PAD):
    """One-time parameter prep (hoisted out of the per-call hot path)."""
    samples = jnp.asarray(nystrom_samples, jnp.float32)        # [M, d]
    S1 = jnp.asarray(S1, jnp.float32)                          # [M, F]
    eig = jnp.asarray(eig_vals1, jnp.float32)                  # [F]
    M, _ = samples.shape
    feat_dim = S1.shape[1]

    # Fold diag((eig + 1e-8)^-0.5) and the 50x factor into S1.
    scale = 50.0 * (eig + 1e-8) ** -0.5
    S_scaled = S1 * scale[None, :]                             # [M, F]

    # Fuse the two nn.Linear(F, 1) heads into one narrow weight slab, then
    # fold S_scaled @ W offline (exact, no nonlinearity in between).
    W = jnp.zeros((feat_dim, out_pad), jnp.float32)
    W = W.at[:, 0].set(jnp.asarray(w1, jnp.float32).reshape(feat_dim))
    W = W.at[:, 1].set(jnp.asarray(w2, jnp.float32).reshape(feat_dim))
    SW = jnp.dot(S_scaled, W, precision=jax.lax.Precision.HIGHEST)  # [M, OUT]

    b = jnp.zeros((1, out_pad), jnp.float32)
    b = b.at[0, 0].set(jnp.asarray(b1, jnp.float32).reshape(()))
    b = b.at[0, 1].set(jnp.asarray(b2, jnp.float32).reshape(()))

    # Augmented samples so the MXU directly emits the Gaussian exponent:
    #   st_aug = [ samples^T ; ones(1, M) ; -0.5*||s||^2 ]   -> [d+2, M]
    s_norm2 = jnp.sum(samples * samples, axis=1)[None, :]      # [1, M]
    st_aug = jnp.concatenate(
        [samples.T, jnp.ones((1, M), jnp.float32), -0.5 * s_norm2], axis=0)

    return {"st_aug": st_aug, "SW": SW, "b_fused": b}


def nystrom_v_critic(states, prepped, *, block_b=2048, bf16_head=False):
    """Forward pass of nystromVCritic. Returns (q1, q2), each [B, 1] float32."""
    x = jnp.asarray(states, jnp.float32)
    B, d = x.shape
    st = prepped["st_aug"]          # [d+2, M]
    SW = prepped["SW"]              # [M, OUT]
    b = prepped["b_fused"]          # [1, OUT]
    d_aug, M = st.shape
    OUT = SW.shape[1]
    assert d_aug == d + 2

    # Augment states: x_aug = [x, -0.5*||x||^2, 1]  (tiny [B, d+2] wrapper op).
    x2 = jnp.sum(x * x, axis=-1, keepdims=True)
    x_aug = jnp.concatenate(
        [x, -0.5 * x2, jnp.ones((B, 1), jnp.float32)], axis=1)

    # Tile selection: multiple of 8; >= 2 grid steps when possible so the
    # "parallel" axis shards across both v7x TensorCores (no-op on v5e/v6e).
    block_b = _round_up(max(block_b, 8), 8)
    if B <= 8:
        tb = 8
    else:
        tb = min(block_b, _round_up(pl.cdiv(B, 2), 8))
    B_pad = _round_up(B, tb)
    if B_pad != B:
        x_aug = jnp.pad(x_aug, ((0, B_pad - B), (0, 0)))  # padded rows sliced off
    grid = (B_pad // tb,)

    cost = pl.CostEstimate(
        flops=2 * B_pad * M * (d_aug + OUT),
        transcendentals=B_pad * M,
        bytes_accessed=4 * (B_pad * (d_aug + OUT) + d_aug * M + M * OUT + OUT),
    )

    kernel = functools.partial(_nystrom_v_kernel, bf16_head=bf16_head)
    out = pl.pallas_call(
        kernel,
        out_shape=jax.ShapeDtypeStruct((B_pad, OUT), jnp.float32),
        grid=grid,
        in_specs=[
            pl.BlockSpec((tb, d_aug), lambda i: (i, 0)),   # augmented states
            pl.BlockSpec((d_aug, M), lambda i: (0, 0)),    # augmented samples^T
            pl.BlockSpec((M, OUT), lambda i: (0, 0)),      # folded S*diag*50 @ W
            pl.BlockSpec((1, OUT), lambda i: (0, 0)),      # fused head biases
        ],
        out_specs=pl.BlockSpec((tb, OUT), lambda i: (i, 0)),
        compiler_params=pltpu.CompilerParams(
            dimension_semantics=("parallel",)),
        cost_estimate=cost,
    )(x_aug, st, SW, b)

    q1 = out[:B, 0:1]
    q2 = out[:B, 1:2]
    return q1, q2


def _reference(states, samples, S1, eig_vals1, w1, b1, w2, b2):
    """Direct JAX port of the PyTorch forward (no distance expansion)."""
    hp = jax.lax.Precision.HIGHEST
    x1 = samples[None, :, :] - states[:, None, :]                    # [B, M, d]
    K = jnp.exp(-jnp.sum(x1 * x1, axis=2) / 2.0)                     # [B, M]
    scale = (eig_vals1 + 1e-8) ** -0.5
    phi = 50.0 * jnp.dot(K, S1 * scale[None, :], precision=hp)       # [B, F]
    q1 = jnp.dot(phi, w1.T, precision=hp) + b1
    q2 = jnp.dot(phi, w2.T, precision=hp) + b2
    return q1, q2


if __name__ == "__main__":
    B, s_dim, sample_dim, feat_dim = 8, 3, 128, 64

    key = jax.random.PRNGKey(0)
    ks = jax.random.split(key, 6)

    s_low = jnp.array([-1.0, -1.0, -2.0], jnp.float32)
    s_high = jnp.array([1.0, 1.0, 2.0], jnp.float32)
    samples = (jax.random.uniform(ks[0], (sample_dim, s_dim), jnp.float32)
               * (s_high - s_low) + s_low)                         # nystrom_samples1
    S1 = jax.random.normal(ks[1], (sample_dim, feat_dim), jnp.float32)
    eig_vals = jax.random.uniform(ks[2], (feat_dim,), jnp.float32,
                                  minval=0.5, maxval=2.0)
    w1 = jax.random.normal(ks[3], (1, feat_dim), jnp.float32) / jnp.sqrt(feat_dim)
    w2 = jax.random.normal(ks[4], (1, feat_dim), jnp.float32) / jnp.sqrt(feat_dim)
    b1 = jnp.zeros((1,), jnp.float32)   # init.zeros_(bias), frozen
    b2 = jnp.zeros((1,), jnp.float32)
    states = jax.random.normal(ks[5], (B, s_dim), jnp.float32)

    # TODO(synk): the numpy eigendecomposition / make_K in __init__ is host-side
    # one-time setup and is intentionally not a kernel.
    prepped = prepare_nystrom_params(samples, S1, eig_vals, w1, b1, w2, b2)

    q1, q2 = nystrom_v_critic(states, prepped)
    jax.block_until_ready((q1, q2))

    q1_ref, q2_ref = _reference(states, samples, S1, eig_vals, w1, b1, w2, b2)
    assert q1.shape == (B, 1) and q2.shape == (B, 1)

    ref_scale = float(jnp.max(jnp.abs(jnp.stack([q1_ref, q2_ref])))) + 1.0
    err1 = float(jnp.max(jnp.abs(q1 - q1_ref)))
    err2 = float(jnp.max(jnp.abs(q2 - q2_ref)))
    assert err1 / ref_scale < 2e-3, (err1, ref_scale)
    assert err2 / ref_scale < 2e-3, (err2, ref_scale)

    # Also exercise a ragged, multi-step-grid batch (padding + megacore path).
    states_big = jax.random.normal(ks[5], (37, s_dim), jnp.float32)
    qb1, qb2 = nystrom_v_critic(states_big, prepped)
    jax.block_until_ready((qb1, qb2))
    qb1_ref, qb2_ref = _reference(states_big, samples, S1, eig_vals,
                                  w1, b1, w2, b2)
    big_scale = float(jnp.max(jnp.abs(jnp.stack([qb1_ref, qb2_ref])))) + 1.0
    assert float(jnp.max(jnp.abs(qb1 - qb1_ref))) / big_scale < 2e-3
    assert float(jnp.max(jnp.abs(qb2 - qb2_ref))) / big_scale < 2e-3

    print("KERNEL_OK")
</pallas_src>

<mosaic_0001>
module attributes {stable_mosaic.version = 11 : i64} {
  func.func @_nystrom_v_kernel(%arg0: i32, %arg1: memref<8x5xf32, #tpu.memory_space<vmem>>, %arg2: memref<5x128xf32, #tpu.memory_space<vmem>>, %arg3: memref<128x8xf32, #tpu.memory_space<vmem>>, %arg4: memref<1x8xf32, #tpu.memory_space<vmem>>, %arg5: memref<8x8xf32, #tpu.memory_space<vmem>>) attributes {dimension_semantics = [#tpu.dimension_semantics<parallel>], iteration_bounds = array<i64: 1>, scalar_prefetch = 0 : i64, scratch_operands = 0 : i64, tpu.core_type = #tpu.core_type<tc>, window_params = [{transform_indices = @transform_0, window_bounds = array<i64: 8, 5>}, {pipeline_mode = #tpu.pipeline_mode<synchronous>, transform_indices = @transform_1, window_bounds = array<i64: 5, 128>}, {pipeline_mode = #tpu.pipeline_mode<synchronous>, transform_indices = @transform_2, window_bounds = array<i64: 128, 8>}, {pipeline_mode = #tpu.pipeline_mode<synchronous>, transform_indices = @transform_3, window_bounds = array<i64: 1, 8>}, {transform_indices = @transform_4, window_bounds = array<i64: 8, 8>}]} {
    %c0 = arith.constant 0 : index
    %c0_0 = arith.constant 0 : index
    %0 = vector.load %arg1[%c0, %c0_0] : memref<8x5xf32, #tpu.memory_space<vmem>>, vector<8x5xf32>
    %c0_1 = arith.constant 0 : index
    %c0_2 = arith.constant 0 : index
    %1 = vector.load %arg2[%c0_1, %c0_2] : memref<5x128xf32, #tpu.memory_space<vmem>>, vector<5x128xf32>
    %cst = arith.constant dense<0.000000e+00> : vector<8x128xf32>
    %2 = tpu.matmul %0, %1, %cst {dimension_numbers = #tpu.dot_dimension_numbers<[1], [0], [0], [1], [0, 0, 1, 1], [], []>} : vector<8x5xf32>, vector<5x128xf32>, vector<8x128xf32> -> vector<8x128xf32>
    %cst_3 = arith.constant 0.000000e+00 : f32
    %3 = vector.broadcast %cst_3 : f32 to vector<8x128xf32>
    %4 = arith.minimumf %2, %3 : vector<8x128xf32>
    %5 = math.exp %4 : vector<8x128xf32>
    %c0_4 = arith.constant 0 : index
    %c0_5 = arith.constant 0 : index
    %6 = vector.load %arg3[%c0_4, %c0_5] : memref<128x8xf32, #tpu.memory_space<vmem>>, vector<128x8xf32>
    %cst_6 = arith.constant dense<0.000000e+00> : vector<8x8xf32>
    %7 = tpu.matmul %5, %6, %cst_6 {dimension_numbers = #tpu.dot_dimension_numbers<[1], [0], [0], [1], [0, 0, 1, 1], [], []>} : vector<8x128xf32>, vector<128x8xf32>, vector<8x8xf32> -> vector<8x8xf32>
    %c0_7 = arith.constant 0 : index
    %c0_8 = arith.constant 0 : index
    %8 = vector.load %arg4[%c0_7, %c0_8] : memref<1x8xf32, #tpu.memory_space<vmem>>, vector<1x8xf32>
    %9 = vector.broadcast %8 : vector<1x8xf32> to vector<8x8xf32>
    %10 = arith.addf %7, %9 : vector<8x8xf32>
    %c0_9 = arith.constant 0 : index
    %c0_10 = arith.constant 0 : index
    %11 = vector.load %arg5[%c0_9, %c0_10] : memref<8x8xf32, #tpu.memory_space<vmem>>, vector<8x8xf32>
    tpu.vector_store %arg5[%c0_9, %c0_10], %10 {strides = array<i32>} : memref<8x8xf32, #tpu.memory_space<vmem>>, vector<8x8xf32>,
    return
  }
  func.func @transform_0(%arg0: i32) -> (i32, i32) {
    %c0_i32 = arith.constant 0 : i32
    %c0_i32_0 = arith.constant 0 : i32
    return %arg0, %c0_i32 : i32, i32
  }
  func.func @transform_1(%arg0: i32) -> (i32, i32) {
    %c0_i32 = arith.constant 0 : i32
    %c0_i32_0 = arith.constant 0 : i32
    %c0_i32_1 = arith.constant 0 : i32
    return %c0_i32, %c0_i32_0 : i32, i32
  }
  func.func @transform_2(%arg0: i32) -> (i32, i32) {
    %c0_i32 = arith.constant 0 : i32
    %c0_i32_0 = arith.constant 0 : i32
    %c0_i32_1 = arith.constant 0 : i32
    return %c0_i32, %c0_i32_0 : i32, i32
  }
  func.func @transform_3(%arg0: i32) -> (i32, i32) {
    %c0_i32 = arith.constant 0 : i32
    %c0_i32_0 = arith.constant 0 : i32
    %c0_i32_1 = arith.constant 0 : i32
    return %c0_i32, %c0_i32_0 : i32, i32
  }
  func.func @transform_4(%arg0: i32) -> (i32, i32) {
    %c0_i32 = arith.constant 0 : i32
    %c0_i32_0 = arith.constant 0 : i32
    return %arg0, %c0_i32 : i32, i32
  }
}

</mosaic_0001>

<llo_original>
// kernel: tpu_custom_call.1
$region0: #{tpu_custom_call.1}
  #allocation0 [shape = 'u32[]', space=smem, size = 0x4, offset = 0x4, fixed_abs, tag = 'smem constant byte address 0x4 - core index']
  #allocation1 [shape = 'u32[144,128]{1,0:T(1,128)}', space=vmem, size = 0x12000, scoped, tag = 'internal scratch']
  %s0 = inlined_call_operand.vmem [shape: f32[8,5], index: 0, kind: input, shape index: {}]
  %s1 = inlined_call_operand.vmem [shape: f32[5,128], index: 1, kind: input, shape index: {}]
  %s2 = inlined_call_operand.vmem [shape: f32[128,8], index: 2, kind: input, shape index: {}]
  %s3 = inlined_call_operand.vmem [shape: f32[1,8], index: 3, kind: input, shape index: {}]
  %s4 = inlined_call_operand.hbm [shape: f32[8,8], index: 4, kind: output, shape index: {}]
  %s5 = sld [smem:[#allocation0]]
  $region26: #{tpu_custom_call.1} parent=0
    _
  %s7 = ssub.s32 1, %s5
  %s8 = scalar_select 0, %s7, %s5
  $region1: #{tpu_custom_call.1} parent=0
    #allocation2 [shape = 'u8[4096]{0}', space=vmem, size = 0x1000, scoped, tag = 'output window, operand 0, single buffered']
    #allocation3 [shape = 's32[1]{0}', space=sflag, size = 0x4, scoped, tag = 'scoped memory for tpu_custom_call.1']
    %9 = vsyncpa [#allocation3], 0
    // Predicated region
    $region2: #{tpu_custom_call.1} parent=1 // pred_check
      _
    $region3: #{tpu_custom_call.1} parent=1 // pred_check_branch
      %11 = sbr.rel (0) target = $region5
    $region4: #{tpu_custom_call.1} parent=1 // pred_region
      _
    $region5: #{tpu_custom_call.1} parent=1 // pred_fallthru
      _
    // Predicated region
    $region6: #{tpu_custom_call.1} parent=1 // pred_check
      _
    $region7: #{tpu_custom_call.1} parent=1 // pred_check_branch
      %13 = sbr.rel (0) target = $region9
    $region8: #{tpu_custom_call.1} parent=1 // pred_region
      _
    $region9: #{tpu_custom_call.1} parent=1 // pred_fallthru
      _
    // Predicated region
    $region10: #{tpu_custom_call.1} parent=1 // pred_check
      _
    $region11: #{tpu_custom_call.1} parent=1 // pred_check_branch
      %15 = sbr.rel (0) target = $region13
    $region12: #{tpu_custom_call.1} parent=1 // pred_region
      _
    $region13: #{tpu_custom_call.1} parent=1 // pred_fallthru
      _
    // Predicated region
    $region14: #{tpu_custom_call.1} parent=1 // pred_check
      _
    $region15: #{tpu_custom_call.1} parent=1 // pred_check_branch
      %17 = sbr.rel (0) target = $region17
    $region16: #{tpu_custom_call.1} parent=1 // pred_region
      _
    $region17: #{tpu_custom_call.1} parent=1 // pred_fallthru
      _
    %v18 = vld [vmem:[%s0] sm:$0xff]
    %v19 = vld [vmem:[%s1] sm:$0x1f]
    %vm20 = vcmask 39936
    %v22 = vsel %vm20, %v18, 0
    %vm24 = vcmask 1044480
    %v26 = vsel %vm24, %v19, 0
    %28 = vmatprep.subr.mxu0 0.0
    %29 = vmatpush1.msra.mxu0 %v26
    %30 = vmatprep.subr.mxu0 0.0
    %31 = vmatpush1.msra.mxu0 0.0
    %32 = vmatprep.subr.mxu0 0.0
    %33 = vmatpush1.msra.mxu0 0.0
    %34 = vmatprep.subr.mxu0 0.0
    %35 = vmatpush1.msra.mxu0 0.0
    %36 = vmatprep.subr.mxu0 0.0
    %37 = vmatpush1.msra.mxu0 0.0
    %38 = vmatprep.subr.mxu0 0.0
    %39 = vmatpush1.msra.mxu0 0.0
    %40 = vmatprep.subr.mxu0 0.0
    %41 = vmatpush1.msra.mxu0 0.0
    %42 = vmatprep.subr.mxu0 0.0
    %43 = vmatpush1.msra.mxu0 0.0
    %44 = vmatprep.subr.mxu0 0.0
    %45 = vmatpush1.msra.mxu0 0.0
    %46 = vmatprep.subr.mxu0 0.0
    %47 = vmatpush1.msra.mxu0 0.0
    %48 = vmatprep.subr.mxu0 0.0
    %49 = vmatpush1.msra.mxu0 0.0
    %50 = vmatprep.subr.mxu0 0.0
    %51 = vmatpush1.msra.mxu0 0.0
    %52 = vmatprep.subr.mxu0 0.0
    %53 = vmatpush1.msra.mxu0 0.0
    %54 = vmatprep.subr.mxu0 0.0
    %55 = vmatpush1.msra.mxu0 0.0
    %56 = vmatprep.subr.mxu0 0.0
    %57 = vmatpush1.msra.mxu0 0.0
    %58 = vmatprep.subr.mxu0 0.0
    %59 = vmatpush1.msra.mxu0 0.0
    %60 = vmatprep.subr.mxu0 0.0
    %61 = vmatpush1.msra.mxu0 0.0
    %62 = vmatprep.subr.mxu0 0.0
    %63 = vmatpush1.msra.mxu0 0.0
    %64 = vmatprep.subr.mxu0 0.0
    %65 = vmatpush1.msra.mxu0 0.0
    %66 = vmatprep.subr.mxu0 0.0
    %67 = vmatpush1.msra.mxu0 0.0
    %68 = vmatprep.subr.mxu0 0.0
    %69 = vmatpush1.msra.mxu0 0.0
    %70 = vmatprep.subr.mxu0 0.0
    %71 = vmatpush1.msra.mxu0 0.0
    %72 = vmatprep.subr.mxu0 0.0
    %73 = vmatpush1.msra.mxu0 0.0
    %74 = vmatprep.subr.mxu0 0.0
    %75 = vmatpush1.msra.mxu0 0.0
    %76 = vmatprep.subr.mxu0 0.0
    %77 = vmatpush1.msra.mxu0 0.0
    %78 = vmatprep.subr.mxu0 0.0
    %79 = vmatpush1.msra.mxu0 0.0
    %80 = vmatprep.subr.mxu0 0.0
    %81 = vmatpush1.msra.mxu0 0.0
    %82 = vmatprep.subr.mxu0 0.0
    %83 = vmatpush1.msra.mxu0 0.0
    %84 = vmatprep.subr.mxu0 0.0
    %85 = vmatpush1.msra.mxu0 0.0
    %86 = vmatprep.subr.mxu0 0.0
    %87 = vmatpush1.msra.mxu0 0.0
    %88 = vmatprep.subr.mxu0 0.0
    %89 = vmatpush1.msra.mxu0 0.0
    %90 = vmatprep.subr.mxu0 0.0
    %91 = vmatpush1.msra.mxu0 0.0
    %92 = vmatprep.mubr.f32.mxu0 0.0
    %93 = vmatmul.mubr.f32.gmra.mrb[0].mxu0 %v22
    %v94 = vpop.f32.mrb[0].mxu0
    %v95 = vadd.f32 0.0, %v94
    %v96 = vpop.f32.mrb[0].mxu0
    %97 = vdwg.mxu0
    %v98 = vmin.f32 %v95, 0.0
    %v99 = vmul.f32 %v98, 1.442695
    %v100 = vpow.pop %v99
    %v101 = vld [vmem:[%s2] sm:$0xff]
    %v102 = vld [vmem:[%s2 + $0x8] sm:$0xff]
    %v103 = vld [vmem:[%s2 + $0x10] sm:$0xff]
    %v104 = vld [vmem:[%s2 + $0x18] sm:$0xff]
    %v105 = vld [vmem:[%s2 + $0x20] sm:$0xff]
    %v106 = vld [vmem:[%s2 + $0x28] sm:$0xff]
    %v107 = vld [vmem:[%s2 + $0x30] sm:$0xff]
    %v108 = vld [vmem:[%s2 + $0x38] sm:$0xff]
    %v109 = vld [vmem:[%s2 + $0x40] sm:$0xff]
    %v110 = vld [vmem:[%s2 + $0x48] sm:$0xff]
    %v111 = vld [vmem:[%s2 + $0x50] sm:$0xff]
    %v112 = vld [vmem:[%s2 + $0x58] sm:$0xff]
    %v113 = vld [vmem:[%s2 + $0x60] sm:$0xff]
    %v114 = vld [vmem:[%s2 + $0x68] sm:$0xff]
    %v115 = vld [vmem:[%s2 + $0x70] sm:$0xff]
    %v116 = vld [vmem:[%s2 + $0x78] sm:$0xff]
    %v117 = vld [vmem:[%s3] sm:$0x1]
    %v119 = vlaneseq
    %v120 = vshrl.u32 %v119, 7
    %v121 = vsub.s32 0, %v120
    %v122 = vrot.slane %v117, %v121
    %124 = vmatprep.subr.mxu0 0.0
    %125 = vmatpush1.msra.mxu0 %v101
    %126 = vmatprep.subr.mxu0 0.0
    %127 = vmatpush1.msra.mxu0 %v102
    %128 = vmatprep.subr.mxu0 0.0
    %129 = vmatpush1.msra.mxu0 %v103
    %130 = vmatprep.subr.mxu0 0.0
    %131 = vmatpush1.msra.mxu0 %v104
    %132 = vmatprep.subr.mxu0 0.0
    %133 = vmatpush1.msra.mxu0 %v105
    %134 = vmatprep.subr.mxu0 0.0
    %135 = vmatpush1.msra.mxu0 %v106
    %136 = vmatprep.subr.mxu0 0.0
    %137 = vmatpush1.msra.mxu0 %v107
    %138 = vmatprep.subr.mxu0 0.0
    %139 = vmatpush1.msra.mxu0 %v108
    %140 = vmatprep.subr.mxu0 0.0
    %141 = vmatpush1.msra.mxu0 %v109
    %142 = vmatprep.subr.mxu0 0.0
    %143 = vmatpush1.msra.mxu0 %v110
    %144 = vmatprep.subr.mxu0 0.0
    %145 = vmatpush1.msra.mxu0 %v111
    %146 = vmatprep.subr.mxu0 0.0
    %147 = vmatpush1.msra.mxu0 %v112
    %148 = vmatprep.subr.mxu0 0.0
    %149 = vmatpush1.msra.mxu0 %v113
    %150 = vmatprep.subr.mxu0 0.0
    %151 = vmatpush1.msra.mxu0 %v114
    %152 = vmatprep.subr.mxu0 0.0
    %153 = vmatpush1.msra.mxu0 %v115
    %154 = vmatprep.subr.mxu0 0.0
    %155 = vmatpush1.msra.mxu0 %v116
    %156 = vmatprep.subr.mxu0 0.0
    %157 = vmatpush1.msra.mxu0 0.0
    %158 = vmatprep.subr.mxu0 0.0
    %159 = vmatpush1.msra.mxu0 0.0
    %160 = vmatprep.subr.mxu0 0.0
    %161 = vmatpush1.msra.mxu0 0.0
    %162 = vmatprep.subr.mxu0 0.0
    %163 = vmatpush1.msra.mxu0 0.0
    %164 = vmatprep.subr.mxu0 0.0
    %165 = vmatpush1.msra.mxu0 0.0
    %166 = vmatprep.subr.mxu0 0.0
    %167 = vmatpush1.msra.mxu0 0.0
    %168 = vmatprep.subr.mxu0 0.0
    %169 = vmatpush1.msra.mxu0 0.0
    %170 = vmatprep.subr.mxu0 0.0
    %171 = vmatpush1.msra.mxu0 0.0
    %172 = vmatprep.subr.mxu0 0.0
    %173 = vmatpush1.msra.mxu0 0.0
    %174 = vmatprep.subr.mxu0 0.0
    %175 = vmatpush1.msra.mxu0 0.0
    %176 = vmatprep.subr.mxu0 0.0
    %177 = vmatpush1.msra.mxu0 0.0
    %178 = vmatprep.subr.mxu0 0.0
    %179 = vmatpush1.msra.mxu0 0.0
    %180 = vmatprep.subr.mxu0 0.0
    %181 = vmatpush1.msra.mxu0 0.0
    %182 = vmatprep.subr.mxu0 0.0
    %183 = vmatpush1.msra.mxu0 0.0
    %184 = vmatprep.subr.mxu0 0.0
    %185 = vmatpush1.msra.mxu0 0.0
    %186 = vmatprep.subr.mxu0 0.0
    %187 = vmatpush1.msra.mxu0 0.0
    %188 = vmatprep.mubr.f32.mxu0 0.0
    %189 = vmatmul.mubr.f32.gmra.mrb[0].mxu0 %v100
    %v190 = vpop.f32.mrb[0].mxu0
    %v191 = vadd.f32 %v122, %v190
    %v192 = vpop.f32.mrb[0].mxu0
    %193 = vdwg.mxu0
    %vm194 = vcmask 64512
    %195 = vst.msk [vmem:[#allocation2] sm:$0xff] %vm194, %v191
    // Predicated region
    $region18: #{tpu_custom_call.1} parent=1 // pred_check
      _
    $region19: #{tpu_custom_call.1} parent=1 // pred_check_branch
      %197 = sbr.rel (0) target = $region21
    $region20: #{tpu_custom_call.1} parent=1 // pred_region
      %s199 = ssub.s32 128, 128
      %200 = vsyncadd [#allocation3], %s199
      %s202 = sshll.u32 [#allocation2], 4
      %s203 = int_to_ptr.vmem [resolvable:$true] %s202
      %205 = dma.vmem_to_hbm [thread:$0]  %s203, 128, %s4, [#allocation3]
    $region21: #{tpu_custom_call.1} parent=1 // pred_fallthru
      _
    // Predicated region
    $region22: #{tpu_custom_call.1} parent=1 // pred_check
      _
    $region23: #{tpu_custom_call.1} parent=1 // pred_check_branch
      %207 = sbr.rel (0) target = $region25
    $region24: #{tpu_custom_call.1} parent=1 // pred_region
      %208 = dma.done [#allocation3], 128
    $region25: #{tpu_custom_call.1} parent=1 // pred_fallthru
      _
    %209 = vsyncpa [#allocation3], 1

</llo_original>
